<compile_context>
chip_gen: v5e
topology: v5e:2x2
jax: 0.10.0
libtpu: 0.0.40
codegen_flags: <defaults>
</compile_context>

<pallas_src>
import jax
import jax.numpy as jnp
from jax.experimental import pallas as pl
from jax.experimental.pallas import tpu as pltpu


def _round_up(x: int, m: int) -> int:
    return -(-x // m) * m


def _cdiv(a: int, b: int) -> int:
    return -(-a // b)


def _make_tv_kernel(W: int, HW: int, CHW: int):
    """Kernel factory; W / H*W / C*H*W are compile-time constants."""

    def _tv_kernel(x_ref, o_ref):
        # x_ref: (tn, C*H*W) -- samples on sublanes, channel*spatial lane-dense.
        # o_ref: (tn, 1)     -- per-sample TV sums, samples on sublanes.
        x = x_ref[...]                                   # stays in input dtype

        # Neighbour one row below (i -> i+W) and one column right (i -> i+1)
        # via static lane rotates (positive shift == negative shift mod CHW).
        # Rotations that cross a row / channel / sample-chunk boundary land on
        # positions the masks below zero out, so the wrap-around is harmless.
        x_down = pltpu.roll(x, CHW - W, axis=1)          # x[(i + W) % CHW]
        x_right = pltpu.roll(x, CHW - 1, axis=1)         # x[(i + 1) % CHW]

        col = jax.lax.broadcasted_iota(jnp.int32, (1, CHW), 1)
        # Differences + selects in the input dtype (2x packed throughput for
        # bf16 on v6e/v7x); squares and the accumulation are done in f32.
        dh = jnp.where(col % HW < HW - W, x_down - x, 0).astype(jnp.float32)
        dw = jnp.where(col % W != W - 1, x_right - x, 0).astype(jnp.float32)
        acc = dh * dh + dw * dw                          # (tn, CHW) f32

        # Lane-axis reduction on the MXU (ones-vector contraction) instead of
        # a cross-lane XLU reduce tree; each output row depends only on its
        # own input row, so ragged-tail garbage rows never leak into valid
        # rows.
        ones = jnp.ones((CHW, 1), dtype=jnp.float32)
        o_ref[...] = jnp.dot(acc, ones, preferred_element_type=jnp.float32)

    return _tv_kernel


def tv_loss(outputs, masks, *, vmem_budget_bytes=32 * 1024 * 1024,
            min_grid_steps=1):
    """TVLoss forward.

    outputs: (B, L, C, H, W); masks: (B, L, ...) with leading dims B, L.
    vmem_budget_bytes: target per-step working set (double-buffered input
      block + ~5x f32 temporaries).  Stays under the default scoped-VMEM
      limits of v6e/v7x; vmem_limit_bytes below gives headroom on v5e.
    min_grid_steps: leave at 1 for v5e/v6e (single TensorCore); set to 4 on
      v7x so each core still double-buffers after megacore sharding.
    """
    B, L, C, H, W = outputs.shape
    N = B * L
    HW = H * W
    CHW = C * HW

    # Lane-dense input layout: (N, C*H*W).  Pure metadata reshape (no copy);
    # the input dtype is kept through the DMA and only cast inside the kernel.
    x = outputs.reshape(N, CHW)

    # The kernel only needs one scalar per sample from the mask, so the whole
    # mask stays out of the kernel's HBM traffic.
    mask_areas = masks.reshape(N, -1).astype(jnp.float32).sum(axis=1)

    # Tile selection: tn samples per grid step, tn a multiple of 8 (full
    # sublane utilisation + (8,128)-friendly blocks).  No padding: the ragged
    # tail is an edge block that Pallas clips on write.
    in_itemsize = jnp.dtype(outputs.dtype).itemsize
    bytes_per_elem = 2 * in_itemsize + 5 * 4     # dbl-buffered input + f32 temps
    rows_cap = vmem_budget_bytes // (bytes_per_elem * CHW)
    tn_cap = max(8, (int(rows_cap) // 8) * 8)
    tn = int(min(tn_cap, _round_up(N, 8)))
    if min_grid_steps > 1:
        tn = min(tn, max(8, (N // min_grid_steps) // 8 * 8))
    grid = max(1, _cdiv(N, tn))
    # TODO(synk): for very large per-sample C*H*W (v7x, 64 MiB VMEM) add a
    # second grid axis over whole channels (no halo needed) with a
    # pl.when-gated accumulator marked "arbitrary".

    per_sample = pl.pallas_call(
        _make_tv_kernel(W, HW, CHW),
        out_shape=jax.ShapeDtypeStruct((N, 1), jnp.float32),
        grid_spec=pltpu.PrefetchScalarGridSpec(
            num_scalar_prefetch=0,
            grid=(grid,),
            in_specs=[pl.BlockSpec((tn, CHW), lambda n: (n, 0))],
            out_specs=pl.BlockSpec((tn, 1), lambda n: (n, 0)),
        ),
        compiler_params=pltpu.CompilerParams(
            dimension_semantics=("parallel",),
            vmem_limit_bytes=48 * 1024 * 1024,
        ),
    )(x)

    per_sample = per_sample[:, 0]
    # Matches the PyTorch module exactly: no zero-area guard before division.
    return jnp.mean(per_sample / mask_areas)


def tv_loss_reference(outputs, masks):
    B, L, C, H, W = outputs.shape
    x = outputs.reshape(B * L, C, H, W).astype(jnp.float32)
    m = masks.reshape(B * L, -1).astype(jnp.float32)
    mask_areas = m.sum(axis=1)
    h_tv = jnp.sum((x[:, :, 1:, :] - x[:, :, :-1, :]) ** 2, axis=(1, 2, 3))
    w_tv = jnp.sum((x[:, :, :, 1:] - x[:, :, :, :-1]) ** 2, axis=(1, 2, 3))
    return jnp.mean((h_tv + w_tv) / mask_areas)


if __name__ == "__main__":
    key = jax.random.PRNGKey(0)

    # Case 1: original shape (C=4, H=W=16, N=8 -> single 8-sample block).
    k1, k2 = jax.random.split(key)
    B, L, C, H, W = 2, 4, 4, 16, 16
    outputs = jax.random.normal(k1, (B, L, C, H, W), dtype=jnp.float32)
    masks = (jax.random.uniform(k2, (B, L, 1, H, W)) > 0.3).astype(jnp.float32)
    loss = jax.block_until_ready(tv_loss(outputs, masks))
    ref = jax.block_until_ready(tv_loss_reference(outputs, masks))
    assert jnp.allclose(loss, ref, rtol=1e-4, atol=1e-4), (loss, ref)

    # Case 2: odd channel count, non-square spatial, N=6 < tile (exercises the
    # clipped edge-block path; no padding copy anywhere).
    k3, k4 = jax.random.split(k2)
    B2, L2, C2, H2, W2 = 2, 3, 3, 8, 32
    outputs2 = jax.random.normal(k3, (B2, L2, C2, H2, W2), dtype=jnp.float32)
    masks2 = (jax.random.uniform(k4, (B2, L2, 1, H2, W2)) > 0.3).astype(jnp.float32)
    loss2 = jax.block_until_ready(tv_loss(outputs2, masks2))
    ref2 = jax.block_until_ready(tv_loss_reference(outputs2, masks2))
    assert jnp.allclose(loss2, ref2, rtol=1e-4, atol=1e-4), (loss2, ref2)

    # Case 3: bf16 inputs (differences computed in bf16, squares in f32) --
    # looser tolerance against the f32 reference.
    outputs_bf16 = outputs.astype(jnp.bfloat16)
    loss3 = jax.block_until_ready(tv_loss(outputs_bf16, masks))
    ref3 = jax.block_until_ready(tv_loss_reference(outputs_bf16, masks))
    assert jnp.allclose(loss3, ref3, rtol=5e-2, atol=5e-2), (loss3, ref3)

    print("KERNEL_OK")
</pallas_src>

<mosaic_0001>
module attributes {stable_mosaic.version = 11 : i64} {
  func.func @_tv_kernel(%arg0: i32, %arg1: memref<8x1024xf32, #tpu.memory_space<vmem>>, %arg2: memref<8x1xf32, #tpu.memory_space<vmem>>) attributes {dimension_semantics = [#tpu.dimension_semantics<parallel>], iteration_bounds = array<i64: 1>, scalar_prefetch = 0 : i64, scratch_operands = 0 : i64, tpu.core_type = #tpu.core_type<tc>, window_params = [{transform_indices = @transform_0, window_bounds = array<i64: 8, 1024>}, {transform_indices = @transform_1, window_bounds = array<i64: 8, 1>}]} {
    %c0 = arith.constant 0 : index
    %c0_0 = arith.constant 0 : index
    %0 = vector.load %arg1[%c0, %c0_0] : memref<8x1024xf32, #tpu.memory_space<vmem>>, vector<8x1024xf32>
    %c1008_i32 = arith.constant 1008 : i32
    %1 = tpu.dynamic_rotate %0 by %c1008_i32 dim 1 : vector<8x1024xf32>, i32 -> vector<8x1024xf32>
    %c1023_i32 = arith.constant 1023 : i32
    %2 = tpu.dynamic_rotate %0 by %c1023_i32 dim 1 : vector<8x1024xf32>, i32 -> vector<8x1024xf32>
    %3 = tpu.iota {dimensions = array<i32: 1>} : vector<1x1024xi32>
    %c256_i32 = arith.constant 256 : i32
    %c0_i32 = arith.constant 0 : i32
    %4 = arith.cmpi eq, %c256_i32, %c0_i32 : i32
    %c1_i32 = arith.constant 1 : i32
    %5 = arith.select %4, %c1_i32, %c256_i32 : i32
    %6 = vector.broadcast %5 : i32 to vector<1x1024xi32>
    %7 = arith.remsi %3, %6 : vector<1x1024xi32>
    %c0_i32_1 = arith.constant 0 : i32
    %8 = vector.broadcast %c0_i32_1 : i32 to vector<1x1024xi32>
    %9 = arith.cmpi ne, %7, %8 : vector<1x1024xi32>
    %c0_i32_2 = arith.constant 0 : i32
    %10 = vector.broadcast %c0_i32_2 : i32 to vector<1x1024xi32>
    %11 = arith.cmpi slt, %7, %10 : vector<1x1024xi32>
    %c0_i32_3 = arith.constant 0 : i32
    %12 = arith.cmpi slt, %5, %c0_i32_3 : i32
    %13 = vector.broadcast %12 : i1 to vector<1x1024xi1>
    %14 = vector.broadcast %13 : vector<1x1024xi1> to vector<1x1024xi1>
    %15 = arith.xori %11, %14 : vector<1x1024xi1>
    %16 = arith.andi %15, %9 : vector<1x1024xi1>
    %17 = vector.broadcast %5 : i32 to vector<1x1024xi32>
    %18 = arith.addi %7, %17 : vector<1x1024xi32>
    %19 = arith.select %16, %18, %7 : vector<1x1024xi1>, vector<1x1024xi32>
    %c240_i32 = arith.constant 240 : i32
    %20 = vector.broadcast %c240_i32 : i32 to vector<1x1024xi32>
    %21 = arith.cmpi slt, %19, %20 : vector<1x1024xi32>
    %22 = arith.subf %1, %0 : vector<8x1024xf32>
    %c0_i32_4 = arith.constant 0 : i32
    %23 = arith.sitofp %c0_i32_4 : i32 to f32
    %24 = vector.shape_cast %21 : vector<1x1024xi1> to vector<1x1024xi1>
    %25 = vector.broadcast %24 : vector<1x1024xi1> to vector<8x1024xi1>
    %26 = vector.broadcast %23 : f32 to vector<8x1024xf32>
    %27 = arith.select %25, %22, %26 : vector<8x1024xi1>, vector<8x1024xf32>
    %c16_i32 = arith.constant 16 : i32
    %c0_i32_5 = arith.constant 0 : i32
    %28 = arith.cmpi eq, %c16_i32, %c0_i32_5 : i32
    %c1_i32_6 = arith.constant 1 : i32
    %29 = arith.select %28, %c1_i32_6, %c16_i32 : i32
    %30 = vector.broadcast %29 : i32 to vector<1x1024xi32>
    %31 = arith.remsi %3, %30 : vector<1x1024xi32>
    %c0_i32_7 = arith.constant 0 : i32
    %32 = vector.broadcast %c0_i32_7 : i32 to vector<1x1024xi32>
    %33 = arith.cmpi ne, %31, %32 : vector<1x1024xi32>
    %c0_i32_8 = arith.constant 0 : i32
    %34 = vector.broadcast %c0_i32_8 : i32 to vector<1x1024xi32>
    %35 = arith.cmpi slt, %31, %34 : vector<1x1024xi32>
    %c0_i32_9 = arith.constant 0 : i32
    %36 = arith.cmpi slt, %29, %c0_i32_9 : i32
    %37 = vector.broadcast %36 : i1 to vector<1x1024xi1>
    %38 = vector.broadcast %37 : vector<1x1024xi1> to vector<1x1024xi1>
    %39 = arith.xori %35, %38 : vector<1x1024xi1>
    %40 = arith.andi %39, %33 : vector<1x1024xi1>
    %41 = vector.broadcast %29 : i32 to vector<1x1024xi32>
    %42 = arith.addi %31, %41 : vector<1x1024xi32>
    %43 = arith.select %40, %42, %31 : vector<1x1024xi1>, vector<1x1024xi32>
    %c15_i32 = arith.constant 15 : i32
    %44 = vector.broadcast %c15_i32 : i32 to vector<1x1024xi32>
    %45 = arith.cmpi ne, %43, %44 : vector<1x1024xi32>
    %46 = arith.subf %2, %0 : vector<8x1024xf32>
    %c0_i32_10 = arith.constant 0 : i32
    %47 = arith.sitofp %c0_i32_10 : i32 to f32
    %48 = vector.shape_cast %45 : vector<1x1024xi1> to vector<1x1024xi1>
    %49 = vector.broadcast %48 : vector<1x1024xi1> to vector<8x1024xi1>
    %50 = vector.broadcast %47 : f32 to vector<8x1024xf32>
    %51 = arith.select %49, %46, %50 : vector<8x1024xi1>, vector<8x1024xf32>
    %52 = arith.mulf %27, %27 : vector<8x1024xf32>
    %53 = arith.mulf %51, %51 : vector<8x1024xf32>
    %54 = arith.addf %52, %53 : vector<8x1024xf32>
    %cst = arith.constant 1.000000e+00 : f32
    %55 = vector.broadcast %cst : f32 to vector<1024x1xf32>
    %cst_11 = arith.constant dense<0.000000e+00> : vector<8x1xf32>
    %56 = tpu.matmul %54, %55, %cst_11 {dimension_numbers = #tpu.dot_dimension_numbers<[1], [0], [0], [1], [0, 0, 1, 1], [], []>} : vector<8x1024xf32>, vector<1024x1xf32>, vector<8x1xf32> -> vector<8x1xf32>
    %c0_12 = arith.constant 0 : index
    %c0_13 = arith.constant 0 : index
    %57 = vector.load %arg2[%c0_12, %c0_13] : memref<8x1xf32, #tpu.memory_space<vmem>>, vector<8x1xf32>
    tpu.vector_store %arg2[%c0_12, %c0_13], %56 {strides = array<i32>} : memref<8x1xf32, #tpu.memory_space<vmem>>, vector<8x1xf32>,
    return
  }
  func.func @transform_0(%arg0: i32) -> (i32, i32) {
    %c0_i32 = arith.constant 0 : i32
    %c0_i32_0 = arith.constant 0 : i32
    return %arg0, %c0_i32 : i32, i32
  }
  func.func @transform_1(%arg0: i32) -> (i32, i32) {
    %c0_i32 = arith.constant 0 : i32
    %c0_i32_0 = arith.constant 0 : i32
    return %arg0, %c0_i32 : i32, i32
  }
}

</mosaic_0001>

<llo_original>
// kernel: tpu_custom_call.1
$region0: #{tpu_custom_call.1}
  #allocation0 [shape = 'u32[]', space=smem, size = 0x4, offset = 0x4, fixed_abs, tag = 'smem constant byte address 0x4 - core index']
  #allocation1 [shape = 'u32[72,128]{1,0:T(1,128)}', space=vmem, size = 0x9000, scoped, tag = 'internal scratch']
  %s0 = inlined_call_operand.hbm [shape: f32[8,1024], index: 0, kind: input, shape index: {}]
  %s1 = inlined_call_operand.vmem [shape: f32[8,1], index: 1, kind: output, shape index: {}]
  %s2 = sld [smem:[#allocation0]]
  $region18: #{tpu_custom_call.1} parent=0
    _
  %s4 = ssub.s32 1, %s2
  %s5 = scalar_select 0, %s4, %s2
  $region1: #{tpu_custom_call.1} parent=0
    #allocation2 [shape = 'u8[32768]{0}', space=vmem, size = 0x8000, scoped, tag = 'input window, operand 0, single buffered']
    #allocation3 [shape = 's32[1]{0}', space=sflag, size = 0x4, scoped, tag = 'scoped memory for tpu_custom_call.1']
    %6 = vsyncpa [#allocation3], 0
    // Predicated region
    $region2: #{tpu_custom_call.1} parent=1 // pred_check
      _
    $region3: #{tpu_custom_call.1} parent=1 // pred_check_branch
      %8 = sbr.rel (0) target = $region5
    $region4: #{tpu_custom_call.1} parent=1 // pred_region
      %10 = vsyncadd [#allocation3], 0
      %s12 = sshll.u32 %s0, 4
      %s13 = int_to_ptr.hbm [resolvable:$true] %s12
      %s14 = sshll.u32 [#allocation2], 4
      %s15 = int_to_ptr.vmem [resolvable:$true] %s14
      %17 = dma.hbm_to_vmem [thread:$0]  %s13, 1024, %s15, [#allocation3]
    $region5: #{tpu_custom_call.1} parent=1 // pred_fallthru
      _
    // Predicated region
    $region6: #{tpu_custom_call.1} parent=1 // pred_check
      _
    $region7: #{tpu_custom_call.1} parent=1 // pred_check_branch
      %19 = sbr.rel (0) target = $region9
    $region8: #{tpu_custom_call.1} parent=1 // pred_region
      %21 = dma.done [#allocation3], 1024
    $region9: #{tpu_custom_call.1} parent=1 // pred_fallthru
      _
    %v22 = vld [vmem:[#allocation2] sm:$0xff]
    %v23 = vld [vmem:[#allocation2 + $0x8] sm:$0xff]
    %v24 = vld [vmem:[#allocation2 + $0x10] sm:$0xff]
    %v25 = vld [vmem:[#allocation2 + $0x18] sm:$0xff]
    %v26 = vld [vmem:[#allocation2 + $0x20] sm:$0xff]
    %v27 = vld [vmem:[#allocation2 + $0x28] sm:$0xff]
    %v28 = vld [vmem:[#allocation2 + $0x30] sm:$0xff]
    %v29 = vld [vmem:[#allocation2 + $0x38] sm:$0xff]
    %30 = vrot.lane.b32.xlu0 %v22, 112
    %v31 = vpop.permute.xlu0 %30
    %32 = vrot.lane.b32.xlu0 %v23, 112
    %v33 = vpop.permute.xlu0 %32
    %34 = vrot.lane.b32.xlu0 %v24, 112
    %v35 = vpop.permute.xlu0 %34
    %36 = vrot.lane.b32.xlu0 %v25, 112
    %v37 = vpop.permute.xlu0 %36
    %38 = vrot.lane.b32.xlu0 %v26, 112
    %v39 = vpop.permute.xlu0 %38
    %40 = vrot.lane.b32.xlu0 %v27, 112
    %v41 = vpop.permute.xlu0 %40
    %42 = vrot.lane.b32.xlu0 %v28, 112
    %v43 = vpop.permute.xlu0 %42
    %44 = vrot.lane.b32.xlu0 %v29, 112
    %v45 = vpop.permute.xlu0 %44
    %v46 = vlaneseq
    %v47 = vand.u32 %v46, 127
    %vm48 = vcmp.lt.s32.totalorder %v47, 112
    %v49 = vsel %vm48, %v43, %v45
    %v50 = vsel %vm48, %v41, %v43
    %v51 = vsel %vm48, %v39, %v41
    %v52 = vsel %vm48, %v37, %v39
    %v53 = vsel %vm48, %v35, %v37
    %v54 = vsel %vm48, %v33, %v35
    %v55 = vsel %vm48, %v31, %v33
    %v56 = vsel %vm48, %v45, %v31
    %57 = vrot.lane.b32.xlu0 %v22, 127
    %v58 = vpop.permute.xlu0 %57
    %59 = vrot.lane.b32.xlu0 %v23, 127
    %v60 = vpop.permute.xlu0 %59
    %61 = vrot.lane.b32.xlu0 %v24, 127
    %v62 = vpop.permute.xlu0 %61
    %63 = vrot.lane.b32.xlu0 %v25, 127
    %v64 = vpop.permute.xlu0 %63
    %65 = vrot.lane.b32.xlu0 %v26, 127
    %v66 = vpop.permute.xlu0 %65
    %67 = vrot.lane.b32.xlu0 %v27, 127
    %v68 = vpop.permute.xlu0 %67
    %69 = vrot.lane.b32.xlu0 %v28, 127
    %v70 = vpop.permute.xlu0 %69
    %71 = vrot.lane.b32.xlu0 %v29, 127
    %v72 = vpop.permute.xlu0 %71
    %vm73 = vcmp.lt.s32.totalorder %v47, 127
    %v74 = vsel %vm73, %v70, %v72
    %v75 = vsel %vm73, %v68, %v70
    %v76 = vsel %vm73, %v66, %v68
    %v77 = vsel %vm73, %v64, %v66
    %v78 = vsel %vm73, %v62, %v64
    %v79 = vsel %vm73, %v60, %v62
    %v80 = vsel %vm73, %v58, %v60
    %v81 = vsel %vm73, %v72, %v58
    %v82 = vadd.s32 %v47, 128
    %v83 = vadd.s32 %v47, 256
    %v84 = vadd.s32 %v47, 384
    %v85 = vadd.s32 %v47, 512
    %v86 = vadd.s32 %v47, 640
    %v87 = vadd.s32 %v47, 768
    %v88 = vadd.s32 %v47, 896
    %vm89 = vcmp.lt.s32.totalorder %v47, 0
    %v90 = vsub.s32 0, %v47
    %v91 = vsel %vm89, %v90, %v47
    %v92 = vshrl.u32 %v91, 8
    %v93 = vand.u32 %v91, 255
    %v94 = vsub.s32 0, %v93
    %v95 = vsel %vm89, %v94, %v93
    %vm96 = vcmp.lt.s32.totalorder %v82, 0
    %v97 = vsub.s32 0, %v82
    %v98 = vsel %vm96, %v97, %v82
    %v99 = vshrl.u32 %v98, 8
    %v100 = vand.u32 %v98, 255
    %v101 = vsub.s32 0, %v100
    %v102 = vsel %vm96, %v101, %v100
    %vm103 = vcmp.lt.s32.totalorder %v83, 0
    %v104 = vsub.s32 0, %v83
    %v105 = vsel %vm103, %v104, %v83
    %v106 = vshrl.u32 %v105, 8
    %v107 = vand.u32 %v105, 255
    %v108 = vsub.s32 0, %v107
    %v109 = vsel %vm103, %v108, %v107
    %vm110 = vcmp.lt.s32.totalorder %v84, 0
    %v111 = vsub.s32 0, %v84
    %v112 = vsel %vm110, %v111, %v84
    %v113 = vshrl.u32 %v112, 8
    %v114 = vand.u32 %v112, 255
    %v115 = vsub.s32 0, %v114
    %v116 = vsel %vm110, %v115, %v114
    %vm117 = vcmp.lt.s32.totalorder %v85, 0
    %v118 = vsub.s32 0, %v85
    %v119 = vsel %vm117, %v118, %v85
    %v120 = vshrl.u32 %v119, 8
    %v121 = vand.u32 %v119, 255
    %v122 = vsub.s32 0, %v121
    %v123 = vsel %vm117, %v122, %v121
    %vm124 = vcmp.lt.s32.totalorder %v86, 0
    %v125 = vsub.s32 0, %v86
    %v126 = vsel %vm124, %v125, %v86
    %v127 = vshrl.u32 %v126, 8
    %v128 = vand.u32 %v126, 255
    %v129 = vsub.s32 0, %v128
    %v130 = vsel %vm124, %v129, %v128
    %vm131 = vcmp.lt.s32.totalorder %v87, 0
    %v132 = vsub.s32 0, %v87
    %v133 = vsel %vm131, %v132, %v87
    %v134 = vshrl.u32 %v133, 8
    %v135 = vand.u32 %v133, 255
    %v136 = vsub.s32 0, %v135
    %v137 = vsel %vm131, %v136, %v135
    %vm138 = vcmp.lt.s32.totalorder %v88, 0
    %v139 = vsub.s32 0, %v88
    %v140 = vsel %vm138, %v139, %v88
    %v141 = vshrl.u32 %v140, 8
    %v142 = vand.u32 %v140, 255
    %v143 = vsub.s32 0, %v142
    %v144 = vsel %vm138, %v143, %v142
    %vm145 = vcmp.ne.s32.totalorder %v95, 0
    %vm146 = vcmp.ne.s32.totalorder %v102, 0
    %vm147 = vcmp.ne.s32.totalorder %v109, 0
    %vm148 = vcmp.ne.s32.totalorder %v116, 0
    %vm149 = vcmp.ne.s32.totalorder %v123, 0
    %vm150 = vcmp.ne.s32.totalorder %v130, 0
    %vm151 = vcmp.ne.s32.totalorder %v137, 0
    %vm152 = vcmp.ne.s32.totalorder %v144, 0
    %vm153 = vcmp.lt.s32.totalorder %v95, 0
    %vm154 = vcmp.lt.s32.totalorder %v102, 0
    %vm155 = vcmp.lt.s32.totalorder %v109, 0
    %vm156 = vcmp.lt.s32.totalorder %v116, 0
    %vm157 = vcmp.lt.s32.totalorder %v123, 0
    %vm158 = vcmp.lt.s32.totalorder %v130, 0
    %vm159 = vcmp.lt.s32.totalorder %v137, 0
    %vm160 = vcmp.lt.s32.totalorder %v144, 0
    %vm161 = vmand %vm153, %vm145
    %vm162 = vmand %vm154, %vm146
    %vm163 = vmand %vm155, %vm147
    %vm164 = vmand %vm156, %vm148
    %vm165 = vmand %vm157, %vm149
    %vm166 = vmand %vm158, %vm150
    %vm167 = vmand %vm159, %vm151
    %vm168 = vmand %vm160, %vm152
    %v169 = vadd.s32 %v95, 256
    %v170 = vadd.s32 %v102, 256
    %v171 = vadd.s32 %v109, 256
    %v172 = vadd.s32 %v116, 256
    %v173 = vadd.s32 %v123, 256
    %v174 = vadd.s32 %v130, 256
    %v175 = vadd.s32 %v137, 256
    %v176 = vadd.s32 %v144, 256
    %v177 = vsel %vm161, %v169, %v95
    %v178 = vsel %vm162, %v170, %v102
    %v179 = vsel %vm163, %v171, %v109
    %v180 = vsel %vm164, %v172, %v116
    %v181 = vsel %vm165, %v173, %v123
    %v182 = vsel %vm166, %v174, %v130
    %v183 = vsel %vm167, %v175, %v137
    %v184 = vsel %vm168, %v176, %v144
    %vm185 = vcmp.lt.s32.totalorder %v177, 240
    %vm186 = vcmp.lt.s32.totalorder %v178, 240
    %vm187 = vcmp.lt.s32.totalorder %v179, 240
    %vm188 = vcmp.lt.s32.totalorder %v180, 240
    %vm189 = vcmp.lt.s32.totalorder %v181, 240
    %vm190 = vcmp.lt.s32.totalorder %v182, 240
    %vm191 = vcmp.lt.s32.totalorder %v183, 240
    %vm192 = vcmp.lt.s32.totalorder %v184, 240
    %v193 = vsub.f32 %v55, %v22
    %v194 = vsub.f32 %v54, %v23
    %v195 = vsub.f32 %v53, %v24
    %v196 = vsub.f32 %v52, %v25
    %v197 = vsub.f32 %v51, %v26
    %v198 = vsub.f32 %v50, %v27
    %v199 = vsub.f32 %v49, %v28
    %v200 = vsub.f32 %v56, %v29
    %v201 = vsel %vm185, 1, 0
    %v202 = vsel %vm186, 1, 0
    %v203 = vsel %vm187, 1, 0
    %v204 = vsel %vm188, 1, 0
    %v205 = vsel %vm189, 1, 0
    %v206 = vsel %vm190, 1, 0
    %v207 = vsel %vm191, 1, 0
    %v208 = vsel %vm192, 1, 0
    %vm209 = vcmp.eq.s32.totalorder %v201, 1
    %vm210 = vcmp.eq.s32.totalorder %v202, 1
    %vm211 = vcmp.eq.s32.totalorder %v203, 1
    %vm212 = vcmp.eq.s32.totalorder %v204, 1
    %vm213 = vcmp.eq.s32.totalorder %v205, 1
    %vm214 = vcmp.eq.s32.totalorder %v206, 1
    %vm215 = vcmp.eq.s32.totalorder %v207, 1
    %vm216 = vcmp.eq.s32.totalorder %v208, 1
    %v217 = vsel %vm209, %v193, 0.0
    %v218 = vsel %vm210, %v194, 0.0
    %v219 = vsel %vm211, %v195, 0.0
    %v220 = vsel %vm212, %v196, 0.0
    %v221 = vsel %vm213, %v197, 0.0
    %v222 = vsel %vm214, %v198, 0.0
    %v223 = vsel %vm215, %v199, 0.0
    %v224 = vsel %vm216, %v200, 0.0
    %vm225 = vcmp.lt.s32.totalorder %v47, 0
    %v226 = vsub.s32 0, %v47
    %v227 = vsel %vm225, %v226, %v47
    %v228 = vshrl.u32 %v227, 4
    %v229 = vand.u32 %v227, 15
    %v230 = vsub.s32 0, %v229
    %v231 = vsel %vm225, %v230, %v229
    %vm232 = vcmp.lt.s32.totalorder %v82, 0
    %v233 = vsub.s32 0, %v82
    %v234 = vsel %vm232, %v233, %v82
    %v235 = vshrl.u32 %v234, 4
    %v236 = vand.u32 %v234, 15
    %v237 = vsub.s32 0, %v236
    %v238 = vsel %vm232, %v237, %v236
    %vm239 = vcmp.lt.s32.totalorder %v83, 0
    %v240 = vsub.s32 0, %v83
    %v241 = vsel %vm239, %v240, %v83
    %v242 = vshrl.u32 %v241, 4
    %v243 = vand.u32 %v241, 15
    %v244 = vsub.s32 0, %v243
    %v245 = vsel %vm239, %v244, %v243
    %vm246 = vcmp.lt.s32.totalorder %v84, 0
    %v247 = vsub.s32 0, %v84
    %v248 = vsel %vm246, %v247, %v84
    %v249 = vshrl.u32 %v248, 4
    %v250 = vand.u32 %v248, 15
    %v251 = vsub.s32 0, %v250
    %v252 = vsel %vm246, %v251, %v250
    %vm253 = vcmp.lt.s32.totalorder %v85, 0
    %v254 = vsub.s32 0, %v85
    %v255 = vsel %vm253, %v254, %v85
    %v256 = vshrl.u32 %v255, 4
    %v257 = vand.u32 %v255, 15
    %v258 = vsub.s32 0, %v257
    %v259 = vsel %vm253, %v258, %v257
    %vm260 = vcmp.lt.s32.totalorder %v86, 0
    %v261 = vsub.s32 0, %v86
    %v262 = vsel %vm260, %v261, %v86
    %v263 = vshrl.u32 %v262, 4
    %v264 = vand.u32 %v262, 15
    %v265 = vsub.s32 0, %v264
    %v266 = vsel %vm260, %v265, %v264
    %vm267 = vcmp.lt.s32.totalorder %v87, 0
    %v268 = vsub.s32 0, %v87
    %v269 = vsel %vm267, %v268, %v87
    %v270 = vshrl.u32 %v269, 4
    %v271 = vand.u32 %v269, 15
    %v272 = vsub.s32 0, %v271
    %v273 = vsel %vm267, %v272, %v271
    %vm274 = vcmp.lt.s32.totalorder %v88, 0
    %v275 = vsub.s32 0, %v88
    %v276 = vsel %vm274, %v275, %v88
    %v277 = vshrl.u32 %v276, 4
    %v278 = vand.u32 %v276, 15
    %v279 = vsub.s32 0, %v278
    %v280 = vsel %vm274, %v279, %v278
    %vm281 = vcmp.ne.s32.totalorder %v231, 0
    %vm282 = vcmp.ne.s32.totalorder %v238, 0
    %vm283 = vcmp.ne.s32.totalorder %v245, 0
    %vm284 = vcmp.ne.s32.totalorder %v252, 0
    %vm285 = vcmp.ne.s32.totalorder %v259, 0
    %vm286 = vcmp.ne.s32.totalorder %v266, 0
    %vm287 = vcmp.ne.s32.totalorder %v273, 0
    %vm288 = vcmp.ne.s32.totalorder %v280, 0
    %vm289 = vcmp.lt.s32.totalorder %v231, 0
    %vm290 = vcmp.lt.s32.totalorder %v238, 0
    %vm291 = vcmp.lt.s32.totalorder %v245, 0
    %vm292 = vcmp.lt.s32.totalorder %v252, 0
    %vm293 = vcmp.lt.s32.totalorder %v259, 0
    %vm294 = vcmp.lt.s32.totalorder %v266, 0
    %vm295 = vcmp.lt.s32.totalorder %v273, 0
    %vm296 = vcmp.lt.s32.totalorder %v280, 0
    %vm297 = vmand %vm289, %vm281
    %vm298 = vmand %vm290, %vm282
    %vm299 = vmand %vm291, %vm283
    %vm300 = vmand %vm292, %vm284
    %vm301 = vmand %vm293, %vm285
    %vm302 = vmand %vm294, %vm286
    %vm303 = vmand %vm295, %vm287
    %vm304 = vmand %vm296, %vm288
    %v305 = vadd.s32 %v231, 16
    %v306 = vadd.s32 %v238, 16
    %v307 = vadd.s32 %v245, 16
    %v308 = vadd.s32 %v252, 16
    %v309 = vadd.s32 %v259, 16
    %v310 = vadd.s32 %v266, 16
    %v311 = vadd.s32 %v273, 16
    %v312 = vadd.s32 %v280, 16
    %v313 = vsel %vm297, %v305, %v231
    %v314 = vsel %vm298, %v306, %v238
    %v315 = vsel %vm299, %v307, %v245
    %v316 = vsel %vm300, %v308, %v252
    %v317 = vsel %vm301, %v309, %v259
    %v318 = vsel %vm302, %v310, %v266
    %v319 = vsel %vm303, %v311, %v273
    %v320 = vsel %vm304, %v312, %v280
    %vm321 = vcmp.ne.s32.totalorder %v313, 15
    %vm322 = vcmp.ne.s32.totalorder %v314, 15
    %vm323 = vcmp.ne.s32.totalorder %v315, 15
    %vm324 = vcmp.ne.s32.totalorder %v316, 15
    %vm325 = vcmp.ne.s32.totalorder %v317, 15
    %vm326 = vcmp.ne.s32.totalorder %v318, 15
    %vm327 = vcmp.ne.s32.totalorder %v319, 15
    %vm328 = vcmp.ne.s32.totalorder %v320, 15
    %v329 = vsub.f32 %v80, %v22
    %v330 = vsub.f32 %v79, %v23
    %v331 = vsub.f32 %v78, %v24
    %v332 = vsub.f32 %v77, %v25
    %v333 = vsub.f32 %v76, %v26
    %v334 = vsub.f32 %v75, %v27
    %v335 = vsub.f32 %v74, %v28
    %v336 = vsub.f32 %v81, %v29
    %v337 = vsel %vm321, 1, 0
    %v338 = vsel %vm322, 1, 0
    %v339 = vsel %vm323, 1, 0
    %v340 = vsel %vm324, 1, 0
    %v341 = vsel %vm325, 1, 0
    %v342 = vsel %vm326, 1, 0
    %v343 = vsel %vm327, 1, 0
    %v344 = vsel %vm328, 1, 0
    %vm345 = vcmp.eq.s32.totalorder %v337, 1
    %vm346 = vcmp.eq.s32.totalorder %v338, 1
    %vm347 = vcmp.eq.s32.totalorder %v339, 1
    %vm348 = vcmp.eq.s32.totalorder %v340, 1
    %vm349 = vcmp.eq.s32.totalorder %v341, 1
    %vm350 = vcmp.eq.s32.totalorder %v342, 1
    %vm351 = vcmp.eq.s32.totalorder %v343, 1
    %vm352 = vcmp.eq.s32.totalorder %v344, 1
    %v353 = vsel %vm345, %v329, 0.0
    %v354 = vsel %vm346, %v330, 0.0
    %v355 = vsel %vm347, %v331, 0.0
    %v356 = vsel %vm348, %v332, 0.0
    %v357 = vsel %vm349, %v333, 0.0
    %v358 = vsel %vm350, %v334, 0.0
    %v359 = vsel %vm351, %v335, 0.0
    %v360 = vsel %vm352, %v336, 0.0
    %v361 = vmul.f32 %v217, %v217
    %v362 = vmul.f32 %v218, %v218
    %v363 = vmul.f32 %v219, %v219
    %v364 = vmul.f32 %v220, %v220
    %v365 = vmul.f32 %v221, %v221
    %v366 = vmul.f32 %v222, %v222
    %v367 = vmul.f32 %v223, %v223
    %v368 = vmul.f32 %v224, %v224
    %v369 = vmul.f32 %v353, %v353
    %v370 = vmul.f32 %v354, %v354
    %v371 = vmul.f32 %v355, %v355
    %v372 = vmul.f32 %v356, %v356
    %v373 = vmul.f32 %v357, %v357
    %v374 = vmul.f32 %v358, %v358
    %v375 = vmul.f32 %v359, %v359
    %v376 = vmul.f32 %v360, %v360
    %v377 = vadd.f32 %v361, %v369
    %v378 = vadd.f32 %v362, %v370
    %v379 = vadd.f32 %v363, %v371
    %v380 = vadd.f32 %v364, %v372
    %v381 = vadd.f32 %v365, %v373
    %v382 = vadd.f32 %v366, %v374
    %v383 = vadd.f32 %v367, %v375
    %v384 = vadd.f32 %v368, %v376
    %385 = vmatpush.msra.mxu0 1.0
    %386 = vmatpush.msra.mxu0 1.0
    %387 = vmatpush.msra.mxu0 1.0
    %388 = vmatpush.msra.mxu0 1.0
    %389 = vmatpush.msra.mxu0 1.0
    %390 = vmatpush.msra.mxu0 1.0
    %391 = vmatpush.msra.mxu0 1.0
    %392 = vmatpush.msra.mxu0 1.0
    %393 = vmatpush.msra.mxu0 1.0
    %394 = vmatpush.msra.mxu0 1.0
    %395 = vmatpush.msra.mxu0 1.0
    %396 = vmatpush.msra.mxu0 1.0
    %397 = vmatpush.msra.mxu0 1.0
    %398 = vmatpush.msra.mxu0 1.0
    %399 = vmatpush.msra.mxu0 1.0
    %400 = vmatpush.msra.mxu0 1.0
    %401 = vmatmul.f32.gmra.mxu0 %v377
    %v402 = vpop.f32.mrf.mxu0
    %v403 = vadd.f32 0.0, %v402
    %404 = vdwg.mxu0
    %405 = vmatpush.msra.mxu0 1.0
    %406 = vmatpush.msra.mxu0 1.0
    %407 = vmatpush.msra.mxu0 1.0
    %408 = vmatpush.msra.mxu0 1.0
    %409 = vmatpush.msra.mxu0 1.0
    %410 = vmatpush.msra.mxu0 1.0
    %411 = vmatpush.msra.mxu0 1.0
    %412 = vmatpush.msra.mxu0 1.0
    %413 = vmatpush.msra.mxu0 1.0
    %414 = vmatpush.msra.mxu0 1.0
    %415 = vmatpush.msra.mxu0 1.0
    %416 = vmatpush.msra.mxu0 1.0
    %417 = vmatpush.msra.mxu0 1.0
    %418 = vmatpush.msra.mxu0 1.0
    %419 = vmatpush.msra.mxu0 1.0
    %420 = vmatpush.msra.mxu0 1.0
    %421 = vmatmul.f32.gmra.mxu0 %v378
    %v422 = vpop.f32.mrf.mxu0
    %v423 = vadd.f32 %v403, %v422
    %424 = vdwg.mxu0
    %425 = vmatpush.msra.mxu0 1.0
    %426 = vmatpush.msra.mxu0 1.0
    %427 = vmatpush.msra.mxu0 1.0
    %428 = vmatpush.msra.mxu0 1.0
    %429 = vmatpush.msra.mxu0 1.0
    %430 = vmatpush.msra.mxu0 1.0
    %431 = vmatpush.msra.mxu0 1.0
    %432 = vmatpush.msra.mxu0 1.0
    %433 = vmatpush.msra.mxu0 1.0
    %434 = vmatpush.msra.mxu0 1.0
    %435 = vmatpush.msra.mxu0 1.0
    %436 = vmatpush.msra.mxu0 1.0
    %437 = vmatpush.msra.mxu0 1.0
    %438 = vmatpush.msra.mxu0 1.0
    %439 = vmatpush.msra.mxu0 1.0
    %440 = vmatpush.msra.mxu0 1.0
    %441 = vmatmul.f32.gmra.mxu0 %v379
    %v442 = vpop.f32.mrf.mxu0
    %v443 = vadd.f32 %v423, %v442
    %444 = vdwg.mxu0
    %445 = vmatpush.msra.mxu0 1.0
    %446 = vmatpush.msra.mxu0 1.0
    %447 = vmatpush.msra.mxu0 1.0
    %448 = vmatpush.msra.mxu0 1.0
    %449 = vmatpush.msra.mxu0 1.0
    %450 = vmatpush.msra.mxu0 1.0
    %451 = vmatpush.msra.mxu0 1.0
    %452 = vmatpush.msra.mxu0 1.0
    %453 = vmatpush.msra.mxu0 1.0
    %454 = vmatpush.msra.mxu0 1.0
    %455 = vmatpush.msra.mxu0 1.0
    %456 = vmatpush.msra.mxu0 1.0
    %457 = vmatpush.msra.mxu0 1.0
    %458 = vmatpush.msra.mxu0 1.0
    %459 = vmatpush.msra.mxu0 1.0
    %460 = vmatpush.msra.mxu0 1.0
    %461 = vmatmul.f32.gmra.mxu0 %v380
    %v462 = vpop.f32.mrf.mxu0
    %v463 = vadd.f32 %v443, %v462
    %464 = vdwg.mxu0
    %465 = vmatpush.msra.mxu0 1.0
    %466 = vmatpush.msra.mxu0 1.0
    %467 = vmatpush.msra.mxu0 1.0
    %468 = vmatpush.msra.mxu0 1.0
    %469 = vmatpush.msra.mxu0 1.0
    %470 = vmatpush.msra.mxu0 1.0
    %471 = vmatpush.msra.mxu0 1.0
    %472 = vmatpush.msra.mxu0 1.0
    %473 = vmatpush.msra.mxu0 1.0
    %474 = vmatpush.msra.mxu0 1.0
    %475 = vmatpush.msra.mxu0 1.0
    %476 = vmatpush.msra.mxu0 1.0
    %477 = vmatpush.msra.mxu0 1.0
    %478 = vmatpush.msra.mxu0 1.0
    %479 = vmatpush.msra.mxu0 1.0
    %480 = vmatpush.msra.mxu0 1.0
    %481 = vmatmul.f32.gmra.mxu0 %v381
    %v482 = vpop.f32.mrf.mxu0
    %v483 = vadd.f32 %v463, %v482
    %484 = vdwg.mxu0
    %485 = vmatpush.msra.mxu0 1.0
    %486 = vmatpush.msra.mxu0 1.0
    %487 = vmatpush.msra.mxu0 1.0
    %488 = vmatpush.msra.mxu0 1.0
    %489 = vmatpush.msra.mxu0 1.0
    %490 = vmatpush.msra.mxu0 1.0
    %491 = vmatpush.msra.mxu0 1.0
    %492 = vmatpush.msra.mxu0 1.0
    %493 = vmatpush.msra.mxu0 1.0
    %494 = vmatpush.msra.mxu0 1.0
    %495 = vmatpush.msra.mxu0 1.0
    %496 = vmatpush.msra.mxu0 1.0
    %497 = vmatpush.msra.mxu0 1.0
    %498 = vmatpush.msra.mxu0 1.0
    %499 = vmatpush.msra.mxu0 1.0
    %500 = vmatpush.msra.mxu0 1.0
    %501 = vmatmul.f32.gmra.mxu0 %v382
    %v502 = vpop.f32.mrf.mxu0
    %v503 = vadd.f32 %v483, %v502
    %504 = vdwg.mxu0
    %505 = vmatpush.msra.mxu0 1.0
    %506 = vmatpush.msra.mxu0 1.0
    %507 = vmatpush.msra.mxu0 1.0
    %508 = vmatpush.msra.mxu0 1.0
    %509 = vmatpush.msra.mxu0 1.0
    %510 = vmatpush.msra.mxu0 1.0
    %511 = vmatpush.msra.mxu0 1.0
    %512 = vmatpush.msra.mxu0 1.0
    %513 = vmatpush.msra.mxu0 1.0
    %514 = vmatpush.msra.mxu0 1.0
    %515 = vmatpush.msra.mxu0 1.0
    %516 = vmatpush.msra.mxu0 1.0
    %517 = vmatpush.msra.mxu0 1.0
    %518 = vmatpush.msra.mxu0 1.0
    %519 = vmatpush.msra.mxu0 1.0
    %520 = vmatpush.msra.mxu0 1.0
    %521 = vmatmul.f32.gmra.mxu0 %v383
    %v522 = vpop.f32.mrf.mxu0
    %v523 = vadd.f32 %v503, %v522
    %524 = vdwg.mxu0
    %525 = vmatpush.msra.mxu0 1.0
    %526 = vmatpush.msra.mxu0 1.0
    %527 = vmatpush.msra.mxu0 1.0
    %528 = vmatpush.msra.mxu0 1.0
    %529 = vmatpush.msra.mxu0 1.0
    %530 = vmatpush.msra.mxu0 1.0
    %531 = vmatpush.msra.mxu0 1.0
    %532 = vmatpush.msra.mxu0 1.0
    %533 = vmatpush.msra.mxu0 1.0
    %534 = vmatpush.msra.mxu0 1.0
    %535 = vmatpush.msra.mxu0 1.0
    %536 = vmatpush.msra.mxu0 1.0
    %537 = vmatpush.msra.mxu0 1.0
    %538 = vmatpush.msra.mxu0 1.0
    %539 = vmatpush.msra.mxu0 1.0
    %540 = vmatpush.msra.mxu0 1.0
    %541 = vmatmul.f32.gmra.mxu0 %v384
    %v542 = vpop.f32.mrf.mxu0
    %v543 = vadd.f32 %v523, %v542
    %544 = vdwg.mxu0
    %vm545 = vcmask 7168
    %546 = vst.msk [vmem:[%s1] sm:$0xff] %vm545, %v543
    // Predicated region
    $region10: #{tpu_custom_call.1} parent=1 // pred_check
      _
    $region11: #{tpu_custom_call.1} parent=1 // pred_check_branch
      %548 = sbr.rel (0) target = $region13
    $region12: #{tpu_custom_call.1} parent=1 // pred_region
      _
    $region13: #{tpu_custom_call.1} parent=1 // pred_fallthru
      _
    // Predicated region
    $region14: #{tpu_custom_call.1} parent=1 // pred_check
      _
    $region15: #{tpu_custom_call.1} parent=1 // pred_check_branch
      %550 = sbr.rel (0) target = $region17
    $region16: #{tpu_custom_call.1} parent=1 // pred_region
      _
    $region17: #{tpu_custom_call.1} parent=1 // pred_fallthru
      _
    %551 = vsyncpa [#allocation3], 1

</llo_original>
